<compile_context>
chip_gen: v7x
topology: tpu7x:2x2x1
jax: 0.10.0
libtpu: 0.0.40
codegen_flags: <defaults>
</compile_context>

<pallas_src>
import functools
import math

import jax
import jax.numpy as jnp
from jax.experimental import pallas as pl
from jax.experimental.pallas import tpu as pltpu

LANE = 128
SUBLANE = 8


def _round_up(x, m):
    return ((x + m - 1) // m) * m


def _pick_tile(n, cap, quantum):
    """Largest tile <= cap that is a multiple of `quantum` and divides n."""
    t = min(n, cap)
    t = max((t // quantum) * quantum, quantum)
    while n % t != 0:
        t -= quantum
    return t


def _pad2(a, rows, cols, dtype=None):
    out = jnp.zeros((rows, cols), a.dtype if dtype is None else dtype)
    return out.at[: a.shape[0], : a.shape[1]].set(a.astype(out.dtype))


# ----------------------------------------------------------------------------
# Kernel 1: vision encoder = flatten + Linear(D -> F) + ReLU, tiled over (N, K)
# ----------------------------------------------------------------------------
def _vision_linear_kernel(x_ref, w_ref, b_ref, o_ref, acc_ref, *, compute_dtype):
    k = pl.program_id(1)

    @pl.when(k == 0)
    def _():
        acc_ref[...] = jnp.zeros_like(acc_ref)

    acc_ref[...] += jnp.dot(
        x_ref[...].astype(compute_dtype), w_ref[...],
        preferred_element_type=jnp.float32)

    @pl.when(k == pl.num_programs(1) - 1)
    def _():
        y = acc_ref[...] + b_ref[...]
        o_ref[...] = jnp.maximum(y, 0.0).astype(o_ref.dtype)


def vision_encoder(x_flat, w, b, *, compute_dtype, tn_cap=256, tk_cap=512):
    # x_flat: (Np, Dp) f32, w: (Dp, Fp) bf16, b: (1, Fp) f32 -> (Np, Fp) f32
    Np, Dp = x_flat.shape
    Fp = w.shape[1]
    tn = _pick_tile(Np, tn_cap, SUBLANE)
    tk = _pick_tile(Dp, tk_cap, LANE)
    grid = (Np // tn, Dp // tk)

    return pl.pallas_call(
        functools.partial(_vision_linear_kernel, compute_dtype=compute_dtype),
        out_shape=jax.ShapeDtypeStruct((Np, Fp), jnp.float32),
        grid_spec=pltpu.PrefetchScalarGridSpec(
            num_scalar_prefetch=0,
            grid=grid,
            in_specs=[
                pl.BlockSpec((tn, tk), lambda i, k: (i, k)),
                pl.BlockSpec((tk, Fp), lambda i, k: (k, 0)),
                pl.BlockSpec((1, Fp), lambda i, k: (0, 0)),
            ],
            out_specs=pl.BlockSpec((tn, Fp), lambda i, k: (i, 0)),
            scratch_shapes=[pltpu.VMEM((tn, Fp), jnp.float32)],
        ),
        compiler_params=pltpu.CompilerParams(
            dimension_semantics=("parallel", "arbitrary"),
            vmem_limit_bytes=32 * 1024 * 1024,
        ),
    )(x_flat, w, b)


# ----------------------------------------------------------------------------
# Kernel 2 (fused): temporal transformer block + mean pool
#                   + optional L2-normalize + prototypes Linear (no bias)
# ----------------------------------------------------------------------------
def _temporal_block_kernel(x_ref, wqkv_ref, wo_ref,
                           w1_ref, b1_ref, w2_ref, vec_ref, pw_ref,
                           o_ref, *, F, project, normalize, compute_dtype):
    TB, t, Fp = x_ref.shape
    R = TB * t
    cd = compute_dtype

    x = x_ref[...].reshape(R, Fp)            # f32, padded lanes are zero
    xc = x.astype(cd)

    # --- fused Q/K/V projection: one (R,Fp)x(Fp,3Fp) MXU matmul -------------
    qkv = jnp.dot(xc, wqkv_ref[...], preferred_element_type=jnp.float32)
    q3 = qkv[:, 0 * Fp:1 * Fp].reshape(TB, t, Fp)
    k3 = qkv[:, 1 * Fp:2 * Fp].reshape(TB, t, Fp)
    v3 = qkv[:, 2 * Fp:3 * Fp].reshape(TB, t, Fp)

    # --- per-batch attention: contract last dims directly (no k.T) ----------
    scale = 1.0 / (float(F) ** 0.5)
    s = jnp.einsum("bqf,bkf->bqk", q3, k3,
                   preferred_element_type=jnp.float32) * scale      # (TB,t,t)
    s = s - jnp.max(s, axis=-1, keepdims=True)
    p = jnp.exp(s)
    p = p * pl.reciprocal(jnp.sum(p, axis=-1, keepdims=True), approx=True)
    attn = jnp.einsum("bqk,bkf->bqf", p, v3,
                      preferred_element_type=jnp.float32)           # (TB,t,Fp)

    attn_out = jnp.dot(attn.reshape(R, Fp).astype(cd), wo_ref[...],
                       preferred_element_type=jnp.float32)

    # --- packed LN/bias vectors and valid-lane mask --------------------------
    vecs = vec_ref[...]
    ln1_g, ln1_b = vecs[0:1], vecs[1:2]
    ffn_b2 = vecs[2:3]
    ln2_g, ln2_b = vecs[3:4], vecs[4:5]

    lane = jax.lax.broadcasted_iota(jnp.int32, (1, Fp), 1)
    fmask = (lane < F).astype(jnp.float32)
    inv_F = 1.0 / float(F)

    def layer_norm(h, g, b):
        # padded lanes of h are zero, so plain sums are sums over valid lanes
        mu = jnp.sum(h, axis=-1, keepdims=True) * inv_F
        hc = (h - mu) * fmask
        var = jnp.sum(hc * hc, axis=-1, keepdims=True) * inv_F
        return hc * jax.lax.rsqrt(var + 1e-5) * g + b

    # residual + LN1
    h = layer_norm(x + attn_out, ln1_g, ln1_b)

    # FFN (F -> 2F -> F) + residual + LN2
    f = jnp.dot(h.astype(cd), w1_ref[...],
                preferred_element_type=jnp.float32) + b1_ref[...]
    f = jnp.maximum(f, 0.0)
    f2 = jnp.dot(f.astype(cd), w2_ref[...],
                 preferred_element_type=jnp.float32) + ffn_b2
    h2 = layer_norm(h + f2, ln2_g, ln2_b)

    # mean pool over time -> (TB, Fp)
    pooled = jnp.mean(h2.reshape(TB, t, Fp), axis=1)

    if project:
        if normalize:
            # torch F.normalize(p=2, dim=1, eps=1e-12); padded lanes are zero
            nrm = jnp.sqrt(jnp.sum(pooled * pooled, axis=-1, keepdims=True))
            pooled = pooled * pl.reciprocal(jnp.maximum(nrm, 1e-12), approx=True)
        out = jnp.dot(pooled.astype(cd), pw_ref[...],
                      preferred_element_type=jnp.float32)
        o_ref[...] = out.astype(o_ref.dtype)
    else:
        o_ref[...] = pooled.astype(o_ref.dtype)


def temporal_transformer_and_head(x3, pp, dims, *, project, normalize,
                                  compute_dtype):
    # x3: (b, t, Fp) f32 -> (b, Pp) if project else (b, Fp)
    b, t, Fp = x3.shape
    Hp, Pp, F = dims["Hp"], dims["Pp"], dims["F"]
    TB = b if b <= SUBLANE else SUBLANE
    assert b % TB == 0, "batch must be divisible by the batch tile"
    out_cols = Pp if project else Fp

    def const(shape):
        return pl.BlockSpec(shape, lambda i: (0,) * len(shape))

    return pl.pallas_call(
        functools.partial(_temporal_block_kernel, F=F, project=project,
                          normalize=normalize, compute_dtype=compute_dtype),
        out_shape=jax.ShapeDtypeStruct((b, out_cols), jnp.float32),
        grid_spec=pltpu.PrefetchScalarGridSpec(
            num_scalar_prefetch=0,
            grid=(b // TB,),
            in_specs=[
                pl.BlockSpec((TB, t, Fp), lambda i: (i, 0, 0)),      # x
                const((Fp, 3 * Fp)),                                 # wqkv
                const((Fp, Fp)),                                     # wo
                const((Fp, Hp)), const((1, Hp)), const((Hp, Fp)),    # ffn
                const((SUBLANE, Fp)),                                # packed vecs
                const((Fp, Pp)),                                     # proto w
            ],
            out_specs=pl.BlockSpec((TB, out_cols), lambda i: (i, 0)),
        ),
        compiler_params=pltpu.CompilerParams(
            dimension_semantics=("parallel",),
            vmem_limit_bytes=32 * 1024 * 1024,
        ),
    )(x3, pp["wqkv"], pp["wo"], pp["w1"], pp["b1"], pp["w2"],
      pp["vecs"], pp["proto_w"])


# ----------------------------------------------------------------------------
# Parameters: logical init + one-time host-side padding / bf16 cast
# ----------------------------------------------------------------------------
def init_params(key, c, h, w, out_size, nmb_prototypes):
    F = out_size
    H = 2 * F
    D = c * h * w
    ks = jax.random.split(key, 8)
    s = 0.02
    return {
        "ve_w": jax.random.normal(ks[0], (D, F), jnp.float32) * s,
        "ve_b": jnp.zeros((1, F), jnp.float32),
        "wq": jax.random.normal(ks[1], (F, F), jnp.float32) * s,
        "wk": jax.random.normal(ks[2], (F, F), jnp.float32) * s,
        "wv": jax.random.normal(ks[3], (F, F), jnp.float32) * s,
        "wo": jax.random.normal(ks[4], (F, F), jnp.float32) * s,
        "ln1_g": jnp.ones((1, F), jnp.float32),
        "ln1_b": jnp.zeros((1, F), jnp.float32),
        "w1": jax.random.normal(ks[5], (F, H), jnp.float32) * s,
        "b1": jnp.zeros((1, H), jnp.float32),
        "w2": jax.random.normal(ks[6], (H, F), jnp.float32) * s,
        "b2": jnp.zeros((1, F), jnp.float32),
        "ln2_g": jnp.ones((1, F), jnp.float32),
        "ln2_b": jnp.zeros((1, F), jnp.float32),
        "proto_w": jax.random.normal(ks[7], (F, nmb_prototypes), jnp.float32) * s,
    }


def prepare_params(p, *, compute_dtype=jnp.bfloat16):
    """Zero-pad feature dims to 128 lanes (once, on host), cast MXU weights to
    bf16, pack Q/K/V into one (Fp,3Fp) slab and LN/bias vectors into (8,Fp)."""
    D, F = p["ve_w"].shape
    H = p["w1"].shape[1]
    P = p["proto_w"].shape[1]
    Dp, Fp, Hp, Pp = (_round_up(d, LANE) for d in (D, F, H, P))

    wqkv = jnp.zeros((Fp, 3 * Fp), compute_dtype)
    wqkv = wqkv.at[:F, 0 * Fp:0 * Fp + F].set(p["wq"].astype(compute_dtype))
    wqkv = wqkv.at[:F, 1 * Fp:1 * Fp + F].set(p["wk"].astype(compute_dtype))
    wqkv = wqkv.at[:F, 2 * Fp:2 * Fp + F].set(p["wv"].astype(compute_dtype))

    pp = {
        "ve_w": _pad2(p["ve_w"], Dp, Fp, compute_dtype),
        "ve_b": _pad2(p["ve_b"], 1, Fp, jnp.float32),
        "wqkv": wqkv,
        "wo": _pad2(p["wo"], Fp, Fp, compute_dtype),
        "w1": _pad2(p["w1"], Fp, Hp, compute_dtype),
        "b1": _pad2(p["b1"], 1, Hp, jnp.float32),
        "w2": _pad2(p["w2"], Hp, Fp, compute_dtype),
        "proto_w": _pad2(p["proto_w"], Fp, Pp, compute_dtype),
    }
    vecs = jnp.zeros((SUBLANE, Fp), jnp.float32)
    vecs = vecs.at[0, :F].set(p["ln1_g"][0])
    vecs = vecs.at[1, :F].set(p["ln1_b"][0])
    vecs = vecs.at[2, :F].set(p["b2"][0])
    vecs = vecs.at[3, :F].set(p["ln2_g"][0])
    vecs = vecs.at[4, :F].set(p["ln2_b"][0])
    pp["vecs"] = vecs

    dims = dict(D=D, F=F, H=H, P=P, Dp=Dp, Fp=Fp, Hp=Hp, Pp=Pp)
    return pp, dims


# ----------------------------------------------------------------------------
# VisualMotionEncoder forward
# ----------------------------------------------------------------------------
def visual_motion_encoder_forward(image, state, padded_params, dims, *,
                                  no_proj=False, normalize=True,
                                  start_end=False, goal_condition=False,
                                  compute_dtype=jnp.bfloat16):
    """
    image: (b, t, c, h, w) float32 (NCHW per frame, PyTorch convention)
    state: (b, t, f) -- accepted but unused, matching the reference module.
    """
    del state  # unused by get_state_representation in the reference code
    b, t, c, h, w = image.shape

    if start_end:
        if goal_condition:
            image = image[:, jnp.array([0, t - 2, t - 1])]
        else:
            image = image[:, jnp.array([0, t - 1])]
        t = image.shape[1]

    D, Dp, F, Fp, P = dims["D"], dims["Dp"], dims["F"], dims["Fp"], dims["P"]
    N = b * t

    # 'b t c h w -> (b t) c h w' then row-major flatten (matches torch reshape)
    x_flat = image.reshape(N, D)
    if Dp != D:
        x_flat = jnp.pad(x_flat, ((0, 0), (0, Dp - D)))
    Np = _round_up(N, SUBLANE)
    if Np != N:
        x_flat = jnp.pad(x_flat, ((0, Np - N), (0, 0)))

    # vision encoder (tiled Pallas kernel): (Np, Dp) -> (Np, Fp)
    img_enc = vision_encoder(x_flat, padded_params["ve_w"],
                             padded_params["ve_b"], compute_dtype=compute_dtype)
    img_enc = img_enc[:N]
    state_repr = img_enc.reshape(b, t, Fp)   # '(b t) f -> b t f'

    # fused transformer + (normalize) + prototypes kernel
    project = not no_proj
    out = temporal_transformer_and_head(
        state_repr, padded_params, dims, project=project,
        normalize=(normalize and project), compute_dtype=compute_dtype)

    # slice padded lanes off on the host
    return out[:, :P] if project else out[:, :F]


# ----------------------------------------------------------------------------
# Pure-JAX reference (same bf16 weight/activation casting, exact reciprocals)
# ----------------------------------------------------------------------------
def reference_forward(image, pp, dims, *, no_proj=False, normalize=True,
                      compute_dtype=jnp.bfloat16):
    b, t = image.shape[:2]
    D, F, H, P, Fp = dims["D"], dims["F"], dims["H"], dims["P"], dims["Fp"]

    def mm(a, w):
        return jnp.dot(a.astype(compute_dtype), w.astype(compute_dtype),
                       preferred_element_type=jnp.float32)

    x = image.reshape(b * t, D)
    enc = jnp.maximum(mm(x, pp["ve_w"][:D, :F]) + pp["ve_b"][:1, :F], 0.0)
    enc = enc.reshape(b, t, F)

    wq = pp["wqkv"][:F, 0 * Fp:0 * Fp + F]
    wk = pp["wqkv"][:F, 1 * Fp:1 * Fp + F]
    wv = pp["wqkv"][:F, 2 * Fp:2 * Fp + F]
    vecs = pp["vecs"]
    ln1_g, ln1_b, b2, ln2_g, ln2_b = (vecs[i, :F] for i in range(5))

    def ln(h, g, bb):
        mu = h.mean(-1, keepdims=True)
        var = ((h - mu) ** 2).mean(-1, keepdims=True)
        return (h - mu) / jnp.sqrt(var + 1e-5) * g + bb

    q = mm(enc.reshape(-1, F), wq).reshape(b, t, F)
    k = mm(enc.reshape(-1, F), wk).reshape(b, t, F)
    v = mm(enc.reshape(-1, F), wv).reshape(b, t, F)
    s = jnp.einsum("bqf,bkf->bqk", q, k) / math.sqrt(F)
    p = jax.nn.softmax(s, axis=-1)
    attn = jnp.einsum("bqk,bkf->bqf", p, v)
    attn_out = mm(attn.reshape(-1, F), pp["wo"][:F, :F]).reshape(b, t, F)

    h1 = ln(enc + attn_out, ln1_g, ln1_b)
    f = jnp.maximum(mm(h1.reshape(-1, F), pp["w1"][:F, :H])
                    + pp["b1"][:1, :H], 0.0)
    f2 = mm(f, pp["w2"][:H, :F]).reshape(b, t, F) + b2
    h2 = ln(h1 + f2, ln2_g, ln2_b)
    pooled = h2.mean(axis=1)
    if no_proj:
        return pooled
    if normalize:
        nrm = jnp.linalg.norm(pooled, axis=1, keepdims=True)
        pooled = pooled / jnp.maximum(nrm, 1e-12)
    return mm(pooled, pp["proto_w"][:F, :P])


# TODO(synk): the reference module takes arbitrary vision_encoder /
# temporal_transformer_encoder sub-modules; synthetic stand-ins (flatten+
# Linear+ReLU and a 1-layer transformer with mean pooling) are implemented here.

if __name__ == "__main__":
    key = jax.random.PRNGKey(0)
    k_img, k_state, k_par = jax.random.split(key, 3)

    b, t, c, h, w = 2, 8, 4, 16, 16
    state_size = 4
    out_size = 32
    nmb_prototypes = 16

    image = jax.random.normal(k_img, (b, t, c, h, w), jnp.float32)
    state = jax.random.normal(k_state, (b, t, state_size), jnp.float32)

    params = init_params(k_par, c, h, w, out_size, nmb_prototypes)
    padded_params, dims = prepare_params(params)   # one-time host-side padding

    out = visual_motion_encoder_forward(image, state, padded_params, dims,
                                        no_proj=False, normalize=True)
    out = jax.block_until_ready(out)
    assert out.shape == (b, nmb_prototypes), out.shape

    # correctness check against a pure-JAX reference (same bf16 casting)
    ref = jax.block_until_ready(
        reference_forward(image, padded_params, dims, no_proj=False,
                          normalize=True))
    assert jnp.allclose(out, ref, atol=1e-2, rtol=1e-2), (
        float(jnp.max(jnp.abs(out - ref))))

    # also exercise the no_proj path once
    repr_only = jax.block_until_ready(
        visual_motion_encoder_forward(image, state, padded_params, dims,
                                      no_proj=True))
    assert repr_only.shape == (b, out_size), repr_only.shape

    print("KERNEL_OK")
</pallas_src>

<mosaic_0001>
module attributes {stable_mosaic.version = 11 : i64} {
  func.func @_vision_linear_kernel(%arg0: i32, %arg1: i32, %arg2: memref<16x512xf32, #tpu.memory_space<vmem>>, %arg3: memref<512x128xbf16, #tpu.memory_space<vmem>>, %arg4: memref<1x128xf32, #tpu.memory_space<vmem>>, %arg5: memref<16x128xf32, #tpu.memory_space<vmem>>, %arg6: memref<16x128xf32, #tpu.memory_space<vmem>>) attributes {dimension_semantics = [#tpu.dimension_semantics<parallel>, #tpu.dimension_semantics<arbitrary>], iteration_bounds = array<i64: 1, 2>, scalar_prefetch = 0 : i64, scratch_operands = 1 : i64, tpu.core_type = #tpu.core_type<tc>, window_params = [{transform_indices = @transform_0, window_bounds = array<i64: 16, 512>}, {transform_indices = @transform_1, window_bounds = array<i64: 512, 128>}, {pipeline_mode = #tpu.pipeline_mode<synchronous>, transform_indices = @transform_2, window_bounds = array<i64: 1, 128>}, {transform_indices = @transform_3, window_bounds = array<i64: 16, 128>}]} {
    %c0_i32 = arith.constant 0 : i32
    %0 = arith.cmpi eq, %arg1, %c0_i32 : i32
    %1 = arith.extui %0 : i1 to i32
    %c0_i32_0 = arith.constant 0 : i32
    %2 = arith.cmpi ne, %1, %c0_i32_0 : i32
    scf.if %2 {
      %cst_9 = arith.constant 0.000000e+00 : f32
      %13 = vector.broadcast %cst_9 : f32 to vector<16x128xf32>
      %c0_10 = arith.constant 0 : index
      %c0_11 = arith.constant 0 : index
      %14 = vector.load %arg6[%c0_10, %c0_11] : memref<16x128xf32, #tpu.memory_space<vmem>>, vector<16x128xf32>
      tpu.vector_store %arg6[%c0_10, %c0_11], %13 {strides = array<i32>} : memref<16x128xf32, #tpu.memory_space<vmem>>, vector<16x128xf32>,
    } else {
    }
    %c0 = arith.constant 0 : index
    %c0_1 = arith.constant 0 : index
    %3 = vector.load %arg6[%c0, %c0_1] : memref<16x128xf32, #tpu.memory_space<vmem>>, vector<16x128xf32>
    %c0_2 = arith.constant 0 : index
    %c0_3 = arith.constant 0 : index
    %4 = vector.load %arg2[%c0_2, %c0_3] : memref<16x512xf32, #tpu.memory_space<vmem>>, vector<16x512xf32>
    %5 = arith.truncf %4 : vector<16x512xf32> to vector<16x512xbf16>
    %c0_4 = arith.constant 0 : index
    %c0_5 = arith.constant 0 : index
    %6 = vector.load %arg3[%c0_4, %c0_5] : memref<512x128xbf16, #tpu.memory_space<vmem>>, vector<512x128xbf16>
    %cst = arith.constant dense<0.000000e+00> : vector<16x128xf32>
    %7 = tpu.matmul %5, %6, %cst {dimension_numbers = #tpu.dot_dimension_numbers<[1], [0], [0], [1], [0, 0, 1, 1], [], []>} : vector<16x512xbf16>, vector<512x128xbf16>, vector<16x128xf32> -> vector<16x128xf32>
    %8 = arith.addf %3, %7 : vector<16x128xf32>
    %c0_6 = arith.constant 0 : index
    %c0_7 = arith.constant 0 : index
    %9 = vector.load %arg6[%c0_6, %c0_7] : memref<16x128xf32, #tpu.memory_space<vmem>>, vector<16x128xf32>
    tpu.vector_store %arg6[%c0_6, %c0_7], %8 {strides = array<i32>} : memref<16x128xf32, #tpu.memory_space<vmem>>, vector<16x128xf32>,
    %c1_i32 = arith.constant 1 : i32
    %10 = arith.cmpi eq, %arg1, %c1_i32 : i32
    %11 = arith.extui %10 : i1 to i32
    %c0_i32_8 = arith.constant 0 : i32
    %12 = arith.cmpi ne, %11, %c0_i32_8 : i32
    scf.if %12 {
      %c0_9 = arith.constant 0 : index
      %c0_10 = arith.constant 0 : index
      %13 = vector.load %arg6[%c0_9, %c0_10] : memref<16x128xf32, #tpu.memory_space<vmem>>, vector<16x128xf32>
      %c0_11 = arith.constant 0 : index
      %c0_12 = arith.constant 0 : index
      %14 = vector.load %arg4[%c0_11, %c0_12] : memref<1x128xf32, #tpu.memory_space<vmem>>, vector<1x128xf32>
      %15 = vector.broadcast %14 : vector<1x128xf32> to vector<16x128xf32>
      %16 = arith.addf %13, %15 : vector<16x128xf32>
      %cst_13 = arith.constant 0.000000e+00 : f32
      %17 = vector.broadcast %cst_13 : f32 to vector<16x128xf32>
      %18 = arith.maximumf %16, %17 : vector<16x128xf32>
      %c0_14 = arith.constant 0 : index
      %c0_15 = arith.constant 0 : index
      %19 = vector.load %arg5[%c0_14, %c0_15] : memref<16x128xf32, #tpu.memory_space<vmem>>, vector<16x128xf32>
      tpu.vector_store %arg5[%c0_14, %c0_15], %18 {strides = array<i32>} : memref<16x128xf32, #tpu.memory_space<vmem>>, vector<16x128xf32>,
    } else {
    }
    return
  }
  func.func @transform_0(%arg0: i32, %arg1: i32) -> (i32, i32) {
    %c0_i32 = arith.constant 0 : i32
    return %arg0, %arg1 : i32, i32
  }
  func.func @transform_1(%arg0: i32, %arg1: i32) -> (i32, i32) {
    %c0_i32 = arith.constant 0 : i32
    %c0_i32_0 = arith.constant 0 : i32
    return %arg1, %c0_i32 : i32, i32
  }
  func.func @transform_2(%arg0: i32, %arg1: i32) -> (i32, i32) {
    %c0_i32 = arith.constant 0 : i32
    %c0_i32_0 = arith.constant 0 : i32
    %c0_i32_1 = arith.constant 0 : i32
    return %c0_i32, %c0_i32_0 : i32, i32
  }
  func.func @transform_3(%arg0: i32, %arg1: i32) -> (i32, i32) {
    %c0_i32 = arith.constant 0 : i32
    %c0_i32_0 = arith.constant 0 : i32
    return %arg0, %c0_i32 : i32, i32
  }
}

</mosaic_0001>

<llo_original>
// kernel: tpu_custom_call.1
$region0: #{tpu_custom_call.1}
  #allocation0 [shape = 'u32[]', space=smem, size = 0x4, offset = 0x4, fixed_abs, tag = 'smem constant byte address 0x4 - core index']
  #allocation1 [shape = 'u32[144,128]{1,0:T(1,128)}', space=vmem, size = 0x12000, scoped, tag = 'internal scratch']
  #allocation2 [shape = 'f32[16,128]{1,0:T(8,128)}', space=vmem, size = 0x2000, scoped, tag = 'scratch operand']
  %s0 = inlined_call_operand.hbm [shape: f32[16,1024], index: 0, kind: input, shape index: {}]
  %s1 = inlined_call_operand.hbm [shape: bf16[1024,128], index: 1, kind: input, shape index: {}]
  %s2 = inlined_call_operand.vmem [shape: f32[1,128], index: 2, kind: input, shape index: {}]
  %s3 = inlined_call_operand.hbm [shape: f32[16,128], index: 3, kind: output, shape index: {}]
  %s4 = sld [smem:[#allocation0]]
  $region61: #{tpu_custom_call.1} parent=0
    _
  %s6 = ssub.s32 1, %s4
  %s7 = scalar_select 0, %s6, %s4
  $region1: #{tpu_custom_call.1} parent=0
    #allocation3 [shape = 'u8[65536]{0}', space=vmem, size = 0x10000, scoped, tag = 'input window, operand 0']
    #allocation4 [shape = 's32[2]{0}', space=sflag, size = 0x8, scoped, tag = 'scoped memory for tpu_custom_call.1']
    #allocation5 [shape = 's32[2]{0}', space=sflag, size = 0x8, scoped, tag = 'scoped memory for tpu_custom_call.1']
    #allocation6 [shape = 'u8[262144]{0}', space=vmem, size = 0x40000, scoped, tag = 'input window, operand 1']
    #allocation7 [shape = 's32[2]{0}', space=sflag, size = 0x8, scoped, tag = 'scoped memory for tpu_custom_call.1']
    #allocation8 [shape = 'u8[8192]{0}', space=vmem, size = 0x2000, scoped, tag = 'output window, operand 0, single buffered']
    %8 = vsyncpa [#allocation4], 0
    %s9 = scalar_lea.sflag [#allocation4], 1
    %10 = vsyncpa %s9, 0
    %11 = vsyncpa [#allocation7], 0
    %s12 = scalar_lea.sflag [#allocation7], 1
    %13 = vsyncpa %s12, 0
    %14 = vsyncpa [#allocation5], 0
    loop: start=0, step=1, limit=4
    $region2: #{tpu_custom_call.1} parent=1 // loop_pre_header
      _
    $region3: #{tpu_custom_call.1} parent=1 // loop_header
      %s16 = sphi 0, %s20
      %p17 = scmp.ge.s32.totalorder %s16, 4
      %s23 = sphi 0, %s35
      %s24 = sphi 0, %s31
      %s25 = sphi 0, %s23
      %s26 = sphi 0, %s24
      %s27 = sphi 0, %s25
      %s28 = sphi 0, %s26
      %s40 = sphi 0, %s42
      %s43 = sphi 0, %s40
      %s44 = sphi 0, %s43
      %s60 = sphi 0, %s44
      %s66 = sphi 0, %s68
      %s69 = sphi 0, %s66
      %s70 = sphi 0, %s69
      %s86 = sphi 0, %s70
      %s90 = sphi 0, %s90
      %s92 = sphi 0, %s90
      %s93 = sphi 0, %s92
      %s107 = sphi 0, %s93
      %s113 = sphi 0, %s115
      %s116 = sphi 0, %s113
      %s117 = sphi 0, %s116
      %s133 = sphi 0, %s117
    $region4: #{tpu_custom_call.1} parent=1 // loop_header_branch
      %19 = sbr.rel (%p17) target = $region8
    $region5: #{tpu_custom_call.1} parent=1 // loop_body
      %s21 = ssub.s32 %s16, 1
      %s22 = ssub.s32 %s16, 2
      %s29 = sadd.s32 1, %s24
      %p30 = scmp.ge.s32.totalorder %s29, 2
      %s31 = scalar_select %p30, 0, %s29
      %s32 = sadd.s32 1, %s23
      %s33 = scalar_select %p30, %s32, %s23
      %p34 = scmp.ge.s32.totalorder %s33, 1
      %s35 = scalar_select %p34, 0, %s33
      %s36 = ssub.s32 %s23, %s35
      %s37 = ssub.s32 %s24, %s31
      %s38 = sor.u32 %s36, %s37
      %p39 = scmp.eq.s32.totalorder %s38, 0
      %s41 = sadd.s32 %s40, 1
      %s42 = scalar_select %p39, %s40, %s41
      %p45 = pneg %p39
      %p46 = scmp.eq.s32.totalorder %s16, 1
      %p47 = por %p45, %p46
      %p48 = scmp.ne.s32.totalorder %s40, %s43
      %p49 = scmp.eq.s32.totalorder %s16, 0
      %p50 = por %p48, %p49
      %p51 = scmp.ne.s32.totalorder %s40, %s43
      %p52 = scmp.eq.s32.totalorder %s21, 1
      %p53 = por %p51, %p52
      %p54 = scmp.ne.s32.totalorder %s43, %s44
      %p55 = scmp.eq.s32.totalorder %s21, 0
      %p56 = por %p54, %p55
      %p57 = scmp.ne.s32.totalorder %s43, %s44
      %p58 = scmp.eq.s32.totalorder %s22, 1
      %p59 = por %p57, %p58
      %p61 = scmp.ne.s32.totalorder %s44, %s60
      %p62 = scmp.eq.s32.totalorder %s22, 0
      %p63 = por %p61, %p62
      %s64 = ssub.s32 %s24, %s31
      %p65 = scmp.eq.s32.totalorder %s64, 0
      %s67 = sadd.s32 %s66, 1
      %s68 = scalar_select %p65, %s66, %s67
      %p71 = pneg %p65
      %p72 = scmp.eq.s32.totalorder %s16, 1
      %p73 = por %p71, %p72
      %p74 = scmp.ne.s32.totalorder %s66, %s69
      %p75 = scmp.eq.s32.totalorder %s16, 0
      %p76 = por %p74, %p75
      %p77 = scmp.ne.s32.totalorder %s66, %s69
      %p78 = scmp.eq.s32.totalorder %s21, 1
      %p79 = por %p77, %p78
      %p80 = scmp.ne.s32.totalorder %s69, %s70
      %p81 = scmp.eq.s32.totalorder %s21, 0
      %p82 = por %p80, %p81
      %p83 = scmp.ne.s32.totalorder %s69, %s70
      %p84 = scmp.eq.s32.totalorder %s22, 1
      %p85 = por %p83, %p84
      %p87 = scmp.ne.s32.totalorder %s70, %s86
      %p88 = scmp.eq.s32.totalorder %s22, 0
      %p89 = por %p87, %p88
      %s91 = sadd.s32 %s90, 1
      %p94 = scmp.eq.s32.totalorder %s16, 1
      %p95 = scmp.ne.s32.totalorder %s90, %s92
      %p96 = scmp.eq.s32.totalorder %s16, 0
      %p97 = por %p95, %p96
      %p98 = scmp.ne.s32.totalorder %s90, %s92
      %p99 = scmp.eq.s32.totalorder %s21, 1
      %p100 = por %p98, %p99
      %p101 = scmp.ne.s32.totalorder %s92, %s93
      %p102 = scmp.eq.s32.totalorder %s21, 0
      %p103 = por %p101, %p102
      %p104 = scmp.ne.s32.totalorder %s92, %s93
      %p105 = scmp.eq.s32.totalorder %s22, 1
      %p106 = por %p104, %p105
      %p108 = scmp.ne.s32.totalorder %s93, %s107
      %p109 = scmp.eq.s32.totalorder %s22, 0
      %p110 = por %p108, %p109
      %s111 = ssub.s32 %s23, %s35
      %p112 = scmp.eq.s32.totalorder %s111, 0
      %s114 = sadd.s32 %s113, 1
      %s115 = scalar_select %p112, %s113, %s114
      %p118 = pneg %p112
      %p119 = scmp.eq.s32.totalorder %s16, 1
      %p120 = por %p118, %p119
      %p121 = scmp.ne.s32.totalorder %s113, %s116
      %p122 = scmp.eq.s32.totalorder %s16, 0
      %p123 = por %p121, %p122
      %p124 = scmp.ne.s32.totalorder %s113, %s116
      %p125 = scmp.eq.s32.totalorder %s21, 1
      %p126 = por %p124, %p125
      %p127 = scmp.ne.s32.totalorder %s116, %s117
      %p128 = scmp.eq.s32.totalorder %s21, 0
      %p129 = por %p127, %p128
      %p130 = scmp.ne.s32.totalorder %s116, %s117
      %p131 = scmp.eq.s32.totalorder %s22, 1
      %p132 = por %p130, %p131
      %p134 = scmp.ne.s32.totalorder %s117, %s133
      %p135 = scmp.eq.s32.totalorder %s22, 0
      %p136 = por %p134, %p135
      %p137 = scmp.le.s32.totalorder 1, %s16
      %p138 = scmp.lt.s32.totalorder %s16, 3
      %p139 = pnand %p137, %p138
      %p140 = pneg %p139
      // Predicated region
      $region9: #{tpu_custom_call.1} parent=5 // pred_check
        _
      $region10: #{tpu_custom_call.1} parent=5 // pred_check_branch
        %142 = sbr.rel (%p139) target = $region12
      $region11: #{tpu_custom_call.1} parent=5 // pred_region
        %s143 = ssub.s32 %s16, 1
        // Predicated region
        $region13: #{tpu_custom_call.1} parent=11 // pred_check
          %p144 = pneg %p103
        $region14: #{tpu_custom_call.1} parent=11 // pred_check_branch
          %146 = sbr.rel (%p144) target = $region16
        $region15: #{tpu_custom_call.1} parent=11 // pred_region
          _
        $region16: #{tpu_custom_call.1} parent=11 // pred_fallthru
          _
      $region12: #{tpu_custom_call.1} parent=5 // pred_fallthru
        _
      %p147 = scmp.lt.s32.totalorder %s16, 2
      // Predicated region
      $region17: #{tpu_custom_call.1} parent=5 // pred_check
        %p148 = pneg %p147
      $region18: #{tpu_custom_call.1} parent=5 // pred_check_branch
        %150 = sbr.rel (%p148) target = $region20
      $region19: #{tpu_custom_call.1} parent=5 // pred_region
        // Predicated region
        $region21: #{tpu_custom_call.1} parent=19 // pred_check
          %p151 = pneg %p50
        $region22: #{tpu_custom_call.1} parent=19 // pred_check_branch
          %153 = sbr.rel (%p151) target = $region24
        $region23: #{tpu_custom_call.1} parent=19 // pred_region
          %s154 = sand.u32 %s40, 1
          %s155 = scalar_lea.sflag [#allocation4], %s154
          %s156 = sand.u32 %s40, 1
          %s157 = smul.addr %s156, 64
          %s158 = scalar_lea.vmem [#allocation3], %s157
          %s159 = smul.u32 2, %s23
          %s160 = smul.u32 4, %s24
          %s162 = ssub.s32 1024, 1024
          %163 = vsyncadd %s155, %s162
          %s164 = smul.addr %s159, 8
          %s165 = sadd.s32 %s160, %s164
          %s166 = smul.addr %s165, 128
          %s167 = scalar_lea.hbm %s0, %s166
          %s168 = sshll.u32 %s158, 4
          %s169 = int_to_ptr.vmem [resolvable:$true] %s168
          %174 = dma.hbm_to_vmem [thread:$0]  %s167, 1024, %s169, %s155, 1024, 512, 32
        $region24: #{tpu_custom_call.1} parent=19 // pred_fallthru
          _
        // Predicated region
        $region25: #{tpu_custom_call.1} parent=19 // pred_check
          %p175 = pneg %p76
        $region26: #{tpu_custom_call.1} parent=19 // pred_check_branch
          %177 = sbr.rel (%p175) target = $region28
        $region27: #{tpu_custom_call.1} parent=19 // pred_region
          %s178 = sand.u32 %s66, 1
          %s179 = scalar_lea.sflag [#allocation7], %s178
          %s180 = sand.u32 %s66, 1
          %s181 = smul.addr %s180, 256
          %s182 = scalar_lea.vmem [#allocation6], %s181
          %s183 = smul.u32 64, %s24
          %s185 = ssub.s32 4096, 4096
          %186 = vsyncadd %s179, %s185
          %s187 = smul.addr %s183, 64
          %s188 = scalar_lea.hbm %s1, %s187
          %s189 = sshll.u32 %s182, 4
          %s190 = int_to_ptr.vmem [resolvable:$true] %s189
          %195 = dma.hbm_to_vmem [thread:$0]  %s188, 4096, %s190, %s179, 64, 64, 4
        $region28: #{tpu_custom_call.1} parent=19 // pred_fallthru
          _
      $region20: #{tpu_custom_call.1} parent=5 // pred_fallthru
        _
      %p196 = scmp.le.s32.totalorder 1, %s16
      %p197 = scmp.lt.s32.totalorder %s16, 3
      %p198 = pnand %p196, %p197
      %p199 = pneg %p198
      // Predicated region
      $region29: #{tpu_custom_call.1} parent=5 // pred_check
        _
      $region30: #{tpu_custom_call.1} parent=5 // pred_check_branch
        %201 = sbr.rel (%p198) target = $region32
      $region31: #{tpu_custom_call.1} parent=5 // pred_region
        %s202 = ssub.s32 %s16, 1
        %s203 = sand.u32 %s43, 1
        %s204 = scalar_lea.sflag [#allocation4], %s203
        %s205 = sand.u32 %s43, 1
        %s206 = smul.addr %s205, 64
        %s207 = scalar_lea.vmem [#allocation3], %s206
        // Predicated region
        $region33: #{tpu_custom_call.1} parent=31 // pred_check
          %p208 = pneg %p56
        $region34: #{tpu_custom_call.1} parent=31 // pred_check_branch
          %210 = sbr.rel (%p208) target = $region36
        $region35: #{tpu_custom_call.1} parent=31 // pred_region
          %211 = dma.done %s204, 1024
        $region36: #{tpu_custom_call.1} parent=31 // pred_fallthru
          _
        %s212 = sand.u32 %s69, 1
        %s213 = scalar_lea.sflag [#allocation7], %s212
        %s214 = sand.u32 %s69, 1
        %s215 = smul.addr %s214, 256
        %s216 = scalar_lea.vmem [#allocation6], %s215
        // Predicated region
        $region37: #{tpu_custom_call.1} parent=31 // pred_check
          %p217 = pneg %p82
        $region38: #{tpu_custom_call.1} parent=31 // pred_check_branch
          %219 = sbr.rel (%p217) target = $region40
        $region39: #{tpu_custom_call.1} parent=31 // pred_region
          %220 = dma.done %s213, 4096
        $region40: #{tpu_custom_call.1} parent=31 // pred_fallthru
          _
        %s221 = sand.u32 %s43, 1
        %s222 = scalar_lea.sflag [#allocation4], %s221
        %s223 = sand.u32 %s43, 1
        %s224 = smul.addr %s223, 64
        %s225 = scalar_lea.vmem [#allocation3], %s224
        %p226 = pneg %p56
        %p227 = pneg %p53
        %s228 = sand.u32 %s69, 1
        %s229 = scalar_lea.sflag [#allocation7], %s228
        %s230 = sand.u32 %s69, 1
        %s231 = smul.addr %s230, 256
        %s232 = scalar_lea.vmem [#allocation6], %s231
        %p233 = pneg %p82
        %p234 = pneg %p79
        %p235 = pneg %p103
        %p236 = pneg %p100
        %p237 = pneg %p129
        %p238 = pneg %p126
        %s239 = smul.u32 2, %s25
        %s240 = smul.u32 4, %s26
        %s241 = smul.u32 64, %s26
        %s242 = smul.u32 2, %s25
        %p244 = scmp.eq.s32.totalorder %s26, 0
        // Predicated region
        $region41: #{tpu_custom_call.1} parent=31 // pred_check
          %p245 = pneg %p244
        $region42: #{tpu_custom_call.1} parent=31 // pred_check_branch
          %247 = sbr.rel (%p245) target = $region44
        $region43: #{tpu_custom_call.1} parent=31 // pred_region
          %248 = vst [vmem:[#allocation2] sm:$0xff] 0.0
          %249 = vst [vmem:[#allocation2 + $0x8] sm:$0xff] 0.0
        $region44: #{tpu_custom_call.1} parent=31 // pred_fallthru
          _
        %v250 = vld [vmem:[#allocation2] sm:$0xff]
        %v251 = vld [vmem:[#allocation2 + $0x8] sm:$0xff]
        %v252 = vld [vmem:[%s207] sm:$0xff]
        %v253 = vld [vmem:[%s207 + $0x8] sm:$0xff]
        %v254 = vld [vmem:[%s207 + $0x10] sm:$0xff]
        %v255 = vld [vmem:[%s207 + $0x18] sm:$0xff]
        %v256 = vld [vmem:[%s207 + $0x20] sm:$0xff]
        %v257 = vld [vmem:[%s207 + $0x28] sm:$0xff]
        %v258 = vld [vmem:[%s207 + $0x30] sm:$0xff]
        %v259 = vld [vmem:[%s207 + $0x38] sm:$0xff]
        %v260 = vpack.c.bf16 %v256, %v252
        %v261 = vpack.c.bf16 %v257, %v253
        %v262 = vpack.c.bf16 %v258, %v254
        %v263 = vpack.c.bf16 %v259, %v255
        %v264 = vld [vmem:[%s216] sm:$0xf]
        %v265 = vld [vmem:[%s216 + $0x4] sm:$0xf]
        %v266 = vld [vmem:[%s216 + $0x8] sm:$0xf]
        %v267 = vld [vmem:[%s216 + $0xc] sm:$0xf]
        %v268 = vld [vmem:[%s216 + $0x10] sm:$0xf]
        %v269 = vld [vmem:[%s216 + $0x14] sm:$0xf]
        %v270 = vld [vmem:[%s216 + $0x18] sm:$0xf]
        %v271 = vld [vmem:[%s216 + $0x1c] sm:$0xf]
        %v272 = vld [vmem:[%s216 + $0x20] sm:$0xf]
        %v273 = vld [vmem:[%s216 + $0x24] sm:$0xf]
        %v274 = vld [vmem:[%s216 + $0x28] sm:$0xf]
        %v275 = vld [vmem:[%s216 + $0x2c] sm:$0xf]
        %v276 = vld [vmem:[%s216 + $0x30] sm:$0xf]
        %v277 = vld [vmem:[%s216 + $0x34] sm:$0xf]
        %v278 = vld [vmem:[%s216 + $0x38] sm:$0xf]
        %v279 = vld [vmem:[%s216 + $0x3c] sm:$0xf]
        %v280 = vld [vmem:[%s216 + $0x40] sm:$0xf]
        %v281 = vld [vmem:[%s216 + $0x44] sm:$0xf]
        %v282 = vld [vmem:[%s216 + $0x48] sm:$0xf]
        %v283 = vld [vmem:[%s216 + $0x4c] sm:$0xf]
        %v284 = vld [vmem:[%s216 + $0x50] sm:$0xf]
        %v285 = vld [vmem:[%s216 + $0x54] sm:$0xf]
        %v286 = vld [vmem:[%s216 + $0x58] sm:$0xf]
        %v287 = vld [vmem:[%s216 + $0x5c] sm:$0xf]
        %v288 = vld [vmem:[%s216 + $0x60] sm:$0xf]
        %v289 = vld [vmem:[%s216 + $0x64] sm:$0xf]
        %v290 = vld [vmem:[%s216 + $0x68] sm:$0xf]
        %v291 = vld [vmem:[%s216 + $0x6c] sm:$0xf]
        %v292 = vld [vmem:[%s216 + $0x70] sm:$0xf]
        %v293 = vld [vmem:[%s216 + $0x74] sm:$0xf]
        %v294 = vld [vmem:[%s216 + $0x78] sm:$0xf]
        %v295 = vld [vmem:[%s216 + $0x7c] sm:$0xf]
        %v296 = vld [vmem:[%s216 + $0x80] sm:$0xf]
        %v297 = vld [vmem:[%s216 + $0x84] sm:$0xf]
        %v298 = vld [vmem:[%s216 + $0x88] sm:$0xf]
        %v299 = vld [vmem:[%s216 + $0x8c] sm:$0xf]
        %v300 = vld [vmem:[%s216 + $0x90] sm:$0xf]
        %v301 = vld [vmem:[%s216 + $0x94] sm:$0xf]
        %v302 = vld [vmem:[%s216 + $0x98] sm:$0xf]
        %v303 = vld [vmem:[%s216 + $0x9c] sm:$0xf]
        %v304 = vld [vmem:[%s216 + $0xa0] sm:$0xf]
        %v305 = vld [vmem:[%s216 + $0xa4] sm:$0xf]
        %v306 = vld [vmem:[%s216 + $0xa8] sm:$0xf]
        %v307 = vld [vmem:[%s216 + $0xac] sm:$0xf]
        %v308 = vld [vmem:[%s216 + $0xb0] sm:$0xf]
        %v309 = vld [vmem:[%s216 + $0xb4] sm:$0xf]
        %v310 = vld [vmem:[%s216 + $0xb8] sm:$0xf]
        %v311 = vld [vmem:[%s216 + $0xbc] sm:$0xf]
        %v312 = vld [vmem:[%s216 + $0xc0] sm:$0xf]
        %v313 = vld [vmem:[%s216 + $0xc4] sm:$0xf]
        %v314 = vld [vmem:[%s216 + $0xc8] sm:$0xf]
        %v315 = vld [vmem:[%s216 + $0xcc] sm:$0xf]
        %v316 = vld [vmem:[%s216 + $0xd0] sm:$0xf]
        %v317 = vld [vmem:[%s216 + $0xd4] sm:$0xf]
        %v318 = vld [vmem:[%s216 + $0xd8] sm:$0xf]
        %v319 = vld [vmem:[%s216 + $0xdc] sm:$0xf]
        %v320 = vld [vmem:[%s216 + $0xe0] sm:$0xf]
        %v321 = vld [vmem:[%s216 + $0xe4] sm:$0xf]
        %v322 = vld [vmem:[%s216 + $0xe8] sm:$0xf]
        %v323 = vld [vmem:[%s216 + $0xec] sm:$0xf]
        %v324 = vld [vmem:[%s216 + $0xf0] sm:$0xf]
        %v325 = vld [vmem:[%s216 + $0xf4] sm:$0xf]
        %v326 = vld [vmem:[%s216 + $0xf8] sm:$0xf]
        %v327 = vld [vmem:[%s216 + $0xfc] sm:$0xf]
        %v392 = vunpack.c.l.b16 %v264
        %v393 = vunpack.c.l.b16 %v265
        %v394 = vunpack.c.l.b16 %v266
        %v395 = vunpack.c.l.b16 %v267
        %v396 = vunpack.c.l.b16 %v268
        %v397 = vunpack.c.l.b16 %v269
        %v398 = vunpack.c.l.b16 %v270
        %v399 = vunpack.c.l.b16 %v271
        %v400 = vunpack.c.l.b16 %v272
        %v401 = vunpack.c.l.b16 %v273
        %v402 = vunpack.c.l.b16 %v274
        %v403 = vunpack.c.l.b16 %v275
        %v404 = vunpack.c.l.b16 %v276
        %v405 = vunpack.c.l.b16 %v277
        %v406 = vunpack.c.l.b16 %v278
        %v407 = vunpack.c.l.b16 %v279
        %v408 = vunpack.c.l.b16 %v280
        %v409 = vunpack.c.l.b16 %v281
        %v410 = vunpack.c.l.b16 %v282
        %v411 = vunpack.c.l.b16 %v283
        %v412 = vunpack.c.l.b16 %v284
        %v413 = vunpack.c.l.b16 %v285
        %v414 = vunpack.c.l.b16 %v286
        %v415 = vunpack.c.l.b16 %v287
        %v416 = vunpack.c.l.b16 %v288
        %v417 = vunpack.c.l.b16 %v289
        %v418 = vunpack.c.l.b16 %v290
        %v419 = vunpack.c.l.b16 %v291
        %v420 = vunpack.c.l.b16 %v292
        %v421 = vunpack.c.l.b16 %v293
        %v422 = vunpack.c.l.b16 %v294
        %v423 = vunpack.c.l.b16 %v295
        %v424 = vunpack.c.l.b16 %v296
        %v425 = vunpack.c.l.b16 %v297
        %v426 = vunpack.c.l.b16 %v298
        %v427 = vunpack.c.l.b16 %v299
        %v428 = vunpack.c.l.b16 %v300
        %v429 = vunpack.c.l.b16 %v301
        %v430 = vunpack.c.l.b16 %v302
        %v431 = vunpack.c.l.b16 %v303
        %v432 = vunpack.c.l.b16 %v304
        %v433 = vunpack.c.l.b16 %v305
        %v434 = vunpack.c.l.b16 %v306
        %v435 = vunpack.c.l.b16 %v307
        %v436 = vunpack.c.l.b16 %v308
        %v437 = vunpack.c.l.b16 %v309
        %v438 = vunpack.c.l.b16 %v310
        %v439 = vunpack.c.l.b16 %v311
        %v440 = vunpack.c.l.b16 %v312
        %v441 = vunpack.c.l.b16 %v313
        %v442 = vunpack.c.l.b16 %v314
        %v443 = vunpack.c.l.b16 %v315
        %v444 = vunpack.c.l.b16 %v316
        %v445 = vunpack.c.l.b16 %v317
        %v446 = vunpack.c.l.b16 %v318
        %v447 = vunpack.c.l.b16 %v319
        %v448 = vunpack.c.l.b16 %v320
        %v449 = vunpack.c.l.b16 %v321
        %v450 = vunpack.c.l.b16 %v322
        %v451 = vunpack.c.l.b16 %v323
        %v452 = vunpack.c.l.b16 %v324
        %v453 = vunpack.c.l.b16 %v325
        %v454 = vunpack.c.l.b16 %v326
        %v455 = vunpack.c.l.b16 %v327
        %v456 = vpack.c.b16 %v393, %v392
        %v457 = vpack.c.b16 %v395, %v394
        %v458 = vpack.c.b16 %v397, %v396
        %v459 = vpack.c.b16 %v399, %v398
        %v460 = vpack.c.b16 %v401, %v400
        %v461 = vpack.c.b16 %v403, %v402
        %v462 = vpack.c.b16 %v405, %v404
        %v463 = vpack.c.b16 %v407, %v406
        %v464 = vpack.c.b16 %v409, %v408
        %v465 = vpack.c.b16 %v411, %v410
        %v466 = vpack.c.b16 %v413, %v412
        %v467 = vpack.c.b16 %v415, %v414
        %v468 = vpack.c.b16 %v417, %v416
        %v469 = vpack.c.b16 %v419, %v418
        %v470 = vpack.c.b16 %v421, %v420
        %v471 = vpack.c.b16 %v423, %v422
        %v472 = vpack.c.b16 %v425, %v424
        %v473 = vpack.c.b16 %v427, %v426
        %v474 = vpack.c.b16 %v429, %v428
        %v475 = vpack.c.b16 %v431, %v430
        %v476 = vpack.c.b16 %v433, %v432
        %v477 = vpack.c.b16 %v435, %v434
        %v478 = vpack.c.b16 %v437, %v436
        %v479 = vpack.c.b16 %v439, %v438
        %v480 = vpack.c.b16 %v441, %v440
        %v481 = vpack.c.b16 %v443, %v442
        %v482 = vpack.c.b16 %v445, %v444
        %v483 = vpack.c.b16 %v447, %v446
        %v484 = vpack.c.b16 %v449, %v448
        %v485 = vpack.c.b16 %v451, %v450
        %v486 = vpack.c.b16 %v453, %v452
        %v487 = vpack.c.b16 %v455, %v454
        %520 = vmatprep.subr.bf16.mxu0 0
        %521 = vmatpush1.bf16.msra.mxu0 %v456
        %522 = vmatprep.subr.bf16.mxu0 0
        %523 = vmatpush1.bf16.msra.mxu0 %v457
        %524 = vmatprep.subr.bf16.mxu0 0
        %525 = vmatpush1.bf16.msra.mxu0 %v458
        %526 = vmatprep.subr.bf16.mxu0 0
        %527 = vmatpush1.bf16.msra.mxu0 %v459
        %528 = vmatprep.subr.bf16.mxu0 0
        %529 = vmatpush1.bf16.msra.mxu0 %v460
        %530 = vmatprep.subr.bf16.mxu0 0
        %531 = vmatpush1.bf16.msra.mxu0 %v461
        %532 = vmatprep.subr.bf16.mxu0 0
        %533 = vmatpush1.bf16.msra.mxu0 %v462
        %534 = vmatprep.subr.bf16.mxu0 0
        %535 = vmatpush1.bf16.msra.mxu0 %v463
        %536 = vmatprep.subr.bf16.mxu0 0
        %537 = vmatpush1.bf16.msra.mxu0 %v464
        %538 = vmatprep.subr.bf16.mxu0 0
        %539 = vmatpush1.bf16.msra.mxu0 %v465
        %540 = vmatprep.subr.bf16.mxu0 0
        %541 = vmatpush1.bf16.msra.mxu0 %v466
        %542 = vmatprep.subr.bf16.mxu0 0
        %543 = vmatpush1.bf16.msra.mxu0 %v467
        %544 = vmatprep.subr.bf16.mxu0 0
        %545 = vmatpush1.bf16.msra.mxu0 %v468
        %546 = vmatprep.subr.bf16.mxu0 0
        %547 = vmatpush1.bf16.msra.mxu0 %v469
        %548 = vmatprep.subr.bf16.mxu0 0
        %549 = vmatpush1.bf16.msra.mxu0 %v470
        %550 = vmatprep.subr.bf16.mxu0 0
        %551 = vmatpush1.bf16.msra.mxu0 %v471
        %552 = vmatprep.mubr.bf16.mxu0 %v261
        %553 = vmatmul.mubr.bf16.gmra.mrb[0].mxu0 %v260
        %v554 = vpop.f32.mrb[0].mxu0
        %v555 = vadd.f32 0.0, %v554
        %v556 = vpop.f32.mrb[0].mxu0
        %v557 = vpop.f32.mrb[0].mxu0
        %v558 = vadd.f32 0.0, %v557
        %v559 = vpop.f32.mrb[0].mxu0
        %560 = vdwg.mxu0
        %561 = vmatprep.subr.bf16.mxu0 0
        %562 = vmatpush1.bf16.msra.mxu0 %v472
        %563 = vmatprep.subr.bf16.mxu0 0
        %564 = vmatpush1.bf16.msra.mxu0 %v473
        %565 = vmatprep.subr.bf16.mxu0 0
        %566 = vmatpush1.bf16.msra.mxu0 %v474
        %567 = vmatprep.subr.bf16.mxu0 0
        %568 = vmatpush1.bf16.msra.mxu0 %v475
        %569 = vmatprep.subr.bf16.mxu0 0
        %570 = vmatpush1.bf16.msra.mxu0 %v476
        %571 = vmatprep.subr.bf16.mxu0 0
        %572 = vmatpush1.bf16.msra.mxu0 %v477
        %573 = vmatprep.subr.bf16.mxu0 0
        %574 = vmatpush1.bf16.msra.mxu0 %v478
        %575 = vmatprep.subr.bf16.mxu0 0
        %576 = vmatpush1.bf16.msra.mxu0 %v479
        %577 = vmatprep.subr.bf16.mxu0 0
        %578 = vmatpush1.bf16.msra.mxu0 %v480
        %579 = vmatprep.subr.bf16.mxu0 0
        %580 = vmatpush1.bf16.msra.mxu0 %v481
        %581 = vmatprep.subr.bf16.mxu0 0
        %582 = vmatpush1.bf16.msra.mxu0 %v482
        %583 = vmatprep.subr.bf16.mxu0 0
        %584 = vmatpush1.bf16.msra.mxu0 %v483
        %585 = vmatprep.subr.bf16.mxu0 0
        %586 = vmatpush1.bf16.msra.mxu0 %v484
        %587 = vmatprep.subr.bf16.mxu0 0
        %588 = vmatpush1.bf16.msra.mxu0 %v485
        %589 = vmatprep.subr.bf16.mxu0 0
        %590 = vmatpush1.bf16.msra.mxu0 %v486
        %591 = vmatprep.subr.bf16.mxu0 0
        %592 = vmatpush1.bf16.msra.mxu0 %v487
        %593 = vmatprep.mubr.bf16.mxu0 %v263
        %594 = vmatmul.mubr.bf16.gmra.mrb[0].mxu0 %v262
        %v595 = vpop.f32.mrb[0].mxu0
        %v596 = vadd.f32 %v555, %v595
        %v597 = vpop.f32.mrb[0].mxu0
        %v598 = vpop.f32.mrb[0].mxu0
        %v599 = vadd.f32 %v558, %v598
        %v600 = vpop.f32.mrb[0].mxu0
        %601 = vdwg.mxu0
        %v602 = vadd.f32 %v250, %v596
        %v603 = vadd.f32 %v251, %v599
        %604 = vst [vmem:[#allocation2] sm:$0xff] %v602
        %605 = vst [vmem:[#allocation2 + $0x8] sm:$0xff] %v603
        %p606 = scmp.eq.s32.totalorder %s26, 1
        // Predicated region
        $region45: #{tpu_custom_call.1} parent=31 // pred_check
          %p607 = pneg %p606
        $region46: #{tpu_custom_call.1} parent=31 // pred_check_branch
          %609 = sbr.rel (%p607) target = $region48
        $region47: #{tpu_custom_call.1} parent=31 // pred_region
          %v610 = vld [vmem:[#allocation2] sm:$0xff]
          %v611 = vld [vmem:[#allocation2 + $0x8] sm:$0xff]
          %v612 = vld [vmem:[%s2] sm:$0x1]
          %v614 = vlaneseq
          %v615 = vshrl.u32 %v614, 7
          %v616 = vsub.s32 0, %v615
          %v617 = vrot.slane %v612, %v616
          %v619 = vadd.f32 %v610, %v617
          %v620 = vadd.f32 %v611, %v617
          %v621 = vmax.f32 %v619, 0.0
          %v622 = vmax.f32 %v620, 0.0
          %623 = vst [vmem:[#allocation8] sm:$0xff] %v621
          %624 = vst [vmem:[#allocation8 + $0x8] sm:$0xff] %v622
        $region48: #{tpu_custom_call.1} parent=31 // pred_fallthru
          _
        // Predicated region
        $region49: #{tpu_custom_call.1} parent=31 // pred_check
          %p625 = pneg %p126
        $region50: #{tpu_custom_call.1} parent=31 // pred_check_branch
          %627 = sbr.rel (%p625) target = $region52
        $region51: #{tpu_custom_call.1} parent=31 // pred_region
          %s628 = smul.u32 2, %s25
          %s630 = ssub.s32 256, 256
          %631 = vsyncadd [#allocation5], %s630
          %s632 = smul.addr %s628, 128
          %s633 = scalar_lea.hbm %s3, %s632
          %s634 = sshll.u32 [#allocation8], 4
          %s635 = int_to_ptr.vmem [resolvable:$true] %s634
          %640 = dma.vmem_to_hbm [thread:$0]  %s635, 256, %s633, [#allocation5], 128, 128, 8
        $region52: #{tpu_custom_call.1} parent=31 // pred_fallthru
          _
        // Predicated region
        $region53: #{tpu_custom_call.1} parent=31 // pred_check
          %p641 = pneg %p126
        $region54: #{tpu_custom_call.1} parent=31 // pred_check_branch
          %643 = sbr.rel (%p641) target = $region56
        $region55: #{tpu_custom_call.1} parent=31 // pred_region
          %644 = dma.done [#allocation5], 256
        $region56: #{tpu_custom_call.1} parent=31 // pred_fallthru
          _
      $region32: #{tpu_custom_call.1} parent=5 // pred_fallthru
        _
      %p645 = scmp.le.s32.totalorder 2, %s16
      // Predicated region
      $region57: #{tpu_custom_call.1} parent=5 // pred_check
        %p646 = pneg %p645
      $region58: #{tpu_custom_call.1} parent=5 // pred_check_branch
        %648 = sbr.rel (%p646) target = $region60
      $region59: #{tpu_custom_call.1} parent=5 // pred_region
        %s649 = ssub.s32 %s16, 2
      $region60: #{tpu_custom_call.1} parent=5 // pred_fallthru
        _
    $region6: #{tpu_custom_call.1} parent=1 // loop_footer
      %s20 = sadd.s32 1, %s16
    $region7: #{tpu_custom_call.1} parent=1 // loop_footer_branch
      %15 = sbr.rel target = $region3
    $region8: #{tpu_custom_call.1} parent=1 // loop_exit
      _
    %650 = vsyncpa [#allocation4], 1
    %s651 = scalar_lea.sflag [#allocation4], 1
    %652 = vsyncpa %s651, 1
    %653 = vsyncpa [#allocation7], 1
    %s654 = scalar_lea.sflag [#allocation7], 1
    %655 = vsyncpa %s654, 1
    %656 = vsyncpa [#allocation5], 1
    %s657 = scalar_lea.sflag [#allocation5], 1
    %658 = vsyncpa %s657, 1

</llo_original>
